<compile_context>
chip_gen: v6e
topology: v6e:2x2x1
jax: 0.10.0
libtpu: 0.0.40
codegen_flags: <defaults>
</compile_context>

<pallas_src>
import functools

import jax
import jax.numpy as jnp
from jax import lax
from jax.experimental import pallas as pl
from jax.experimental.pallas import tpu as pltpu


def _round_up(n, m):
    return ((n + m - 1) // m) * m


def mdn_kernel(x_ref, w_ref, b_ref, pi_ref, sm_ref, *, out_feats):
    x = x_ref[...]                       # (tm, in_feats)
    n_pi = pi_ref.shape[-1]              # 128-aligned padded pi width

    # ---- pi head: matmul + softmax (padded cols: w=0, b=-1e30 -> exp()=0) ----
    logits = jnp.dot(x, w_ref[:, :n_pi],
                     preferred_element_type=jnp.float32) + b_ref[:, :n_pi]
    m = jnp.max(logits, axis=-1, keepdims=True)
    e = jnp.exp(logits - m)
    denom = jnp.sum(e, axis=-1, keepdims=True)
    # EUP approx reciprocal + one Newton step: ~free (EUP slot), f32-accurate.
    r = pl.reciprocal(denom, approx=True)
    r = r * (2.0 - denom * r)
    pi_ref[...] = e * r

    # ---- sigma+mu head: one 128-wide packed block -----------------------
    # Columns [0, out_feats) are sigma (exp applied), [out_feats, 2*out_feats)
    # are mu (identity), the rest is padding (sliced off in the wrapper).
    sm = jnp.dot(x, w_ref[:, n_pi:],
                 preferred_element_type=jnp.float32) + b_ref[:, n_pi:]
    cols = lax.broadcasted_iota(jnp.int32, sm.shape, 1)
    sm_ref[...] = jnp.where(cols < out_feats, jnp.exp(sm), sm)


def pack_mdn_params(params, *, out_feats):
    """One-time packing of the three heads into a single lane-dense weight/bias.

    Layout of the fused output axis:
      [ pi logits (padded to 128, pad bias = -1e30) |
        sigma gaussian-0 cols | mu gaussian-0 cols | zero pad to 128 ]
    """
    wpi, bpi, wsig, bsig, wmu, bmu = params
    pi_dim = wpi.shape[1]
    pi_pad = _round_up(pi_dim, 128)
    sm_pad = _round_up(2 * out_feats, 128)

    wpi_p = jnp.pad(wpi, ((0, 0), (0, pi_pad - pi_dim)))
    bpi_p = jnp.pad(bpi, ((0, 0), (0, pi_pad - pi_dim)), constant_values=-1e30)

    w_sm = jnp.concatenate([wsig[:, :out_feats], wmu[:, :out_feats]], axis=1)
    b_sm = jnp.concatenate([bsig[:, :out_feats], bmu[:, :out_feats]], axis=1)
    w_sm = jnp.pad(w_sm, ((0, 0), (0, sm_pad - 2 * out_feats)))
    b_sm = jnp.pad(b_sm, ((0, 0), (0, sm_pad - 2 * out_feats)))

    w_fused = jnp.concatenate([wpi_p, w_sm], axis=1)   # (in_feats, pi_pad+sm_pad)
    b_fused = jnp.concatenate([bpi_p, b_sm], axis=1)   # (1,        pi_pad+sm_pad)
    return dict(w=w_fused, b=b_fused, pi_dim=pi_dim,
                pi_pad=pi_pad, sm_pad=sm_pad, out_feats=out_feats)


def mdn_forward(x, packed, *, tm=None):
    """x: (B, in_feats) float32. Returns (pi, sigma, mu) matching the PyTorch module."""
    w_fused = packed["w"]
    b_fused = packed["b"]
    pi_dim = packed["pi_dim"]
    pi_pad = packed["pi_pad"]
    sm_pad = packed["sm_pad"]
    out_feats = packed["out_feats"]

    B, in_feats = x.shape
    n_total = pi_pad + sm_pad

    # --- Batch tiling: >=2 grid steps when possible (v7x megacore), capped at
    # 512 rows (on v6e you may pass tm=1024; do NOT carry that to v7x). --------
    if tm is None:
        tm = min(512, _round_up(-(-B // 2), 8))
    b_padded = _round_up(B, tm)
    x_p = jnp.pad(x, ((0, b_padded - B), (0, 0))) if b_padded != B else x
    grid = (b_padded // tm,)

    # --- VMEM budget: double-buffered x / outputs + resident weights, with
    # headroom for in-kernel logits scratch. Safe on v5e (16 MiB default) and
    # within v7x's 64 MiB physical VMEM. --------------------------------------
    base = 4 * (2 * tm * in_feats + 2 * in_feats * n_total + 2 * 8 * n_total
                + 2 * tm * pi_pad + 2 * tm * sm_pad)
    vmem_limit = int(min(56 << 20, max(2 * base + (8 << 20), 32 << 20)))

    cost = pl.CostEstimate(
        flops=2 * b_padded * in_feats * n_total,
        transcendentals=b_padded * (pi_pad + sm_pad + 1),
        bytes_accessed=4 * (b_padded * in_feats + in_feats * n_total + n_total
                            + b_padded * (pi_pad + sm_pad)),
    )

    pi_p, sm_p = pl.pallas_call(
        functools.partial(mdn_kernel, out_feats=out_feats),
        out_shape=(
            jax.ShapeDtypeStruct((b_padded, pi_pad), jnp.float32),
            jax.ShapeDtypeStruct((b_padded, sm_pad), jnp.float32),
        ),
        grid_spec=pltpu.PrefetchScalarGridSpec(
            num_scalar_prefetch=0,
            grid=grid,
            in_specs=[
                pl.BlockSpec((tm, in_feats), lambda i: (i, 0)),       # x: batch-tiled
                pl.BlockSpec((in_feats, n_total), lambda i: (0, 0)),  # weights: resident
                pl.BlockSpec((1, n_total), lambda i: (0, 0)),         # bias: resident
            ],
            out_specs=(
                pl.BlockSpec((tm, pi_pad), lambda i: (i, 0)),
                pl.BlockSpec((tm, sm_pad), lambda i: (i, 0)),
            ),
        ),
        compiler_params=pltpu.CompilerParams(
            dimension_semantics=("parallel",),
            vmem_limit_bytes=vmem_limit,
        ),
        cost_estimate=cost,
    )(x_p, w_fused, b_fused)

    # Glue: drop batch/lane padding, split the packed sigma|mu block.
    pi = pi_p[:B, :pi_dim]
    sigma = sm_p[:B, :out_feats]
    mu = sm_p[:B, out_feats:2 * out_feats]
    return pi, sigma, mu


def init_mdn_params(key, in_feats, out_feats, n_gaussians=1,
                    n_modes=5, n_points=200):
    """Deterministic synthetic params. Weights stored as (in, out) = PyTorch W.T."""
    pi_dim = n_modes * n_points * n_gaussians
    so_dim = out_feats * n_gaussians
    ks = jax.random.split(key, 6)
    scale = 1.0 / jnp.sqrt(in_feats)
    wpi = jax.random.uniform(ks[0], (in_feats, pi_dim), jnp.float32, -scale, scale)
    bpi = jax.random.uniform(ks[1], (1, pi_dim), jnp.float32, -scale, scale)
    wsig = jax.random.uniform(ks[2], (in_feats, so_dim), jnp.float32, -scale, scale)
    bsig = jax.random.uniform(ks[3], (1, so_dim), jnp.float32, -scale, scale)
    wmu = jax.random.uniform(ks[4], (in_feats, so_dim), jnp.float32, -scale, scale)
    bmu = jax.random.uniform(ks[5], (1, so_dim), jnp.float32, -scale, scale)
    return wpi, bpi, wsig, bsig, wmu, bmu


def mdn_reference(x, params, *, n_gaussians, out_feats):
    """Pure-JAX reference mirroring the PyTorch forward."""
    wpi, bpi, wsig, bsig, wmu, bmu = params
    pi = jax.nn.softmax(x @ wpi + bpi, axis=1)
    sigma = jnp.exp(x @ wsig + bsig).reshape(x.shape[0], n_gaussians, out_feats)[:, 0]
    mu = (x @ wmu + bmu).reshape(x.shape[0], n_gaussians, out_feats)[:, 0]
    return pi, sigma, mu


if __name__ == "__main__":
    B, IN_FEATS, OUT_FEATS, N_GAUSS = 8, 32, 16, 2

    key = jax.random.PRNGKey(0)
    kx, kp = jax.random.split(key)
    x = jax.random.normal(kx, (B, IN_FEATS), dtype=jnp.float32)
    params = init_mdn_params(kp, IN_FEATS, OUT_FEATS, N_GAUSS)

    # One-time packing (hoisted out of the steady-state forward path).
    packed = pack_mdn_params(params, out_feats=OUT_FEATS)

    pi, sigma, mu = mdn_forward(x, packed)
    jax.block_until_ready((pi, sigma, mu))

    # Correctness check against pure-JAX reference.
    pi_r, sigma_r, mu_r = mdn_reference(x, params, n_gaussians=N_GAUSS,
                                        out_feats=OUT_FEATS)
    assert pi.shape == (B, 5 * 200 * N_GAUSS)
    assert sigma.shape == (B, OUT_FEATS) and mu.shape == (B, OUT_FEATS)
    # pi uses the Newton-refined approx reciprocal -> slightly looser rtol.
    assert jnp.allclose(pi, pi_r, atol=1e-7, rtol=1e-4)
    assert jnp.allclose(sigma, sigma_r, atol=1e-5, rtol=1e-5)
    assert jnp.allclose(mu, mu_r, atol=1e-5, rtol=1e-5)

    print("KERNEL_OK")
</pallas_src>

<mosaic_0001>
module attributes {stable_mosaic.version = 11 : i64} {
  func.func @mdn_kernel(%arg0: i32, %arg1: memref<8x32xf32, #tpu.memory_space<vmem>>, %arg2: memref<32x2176xf32, #tpu.memory_space<vmem>>, %arg3: memref<1x2176xf32, #tpu.memory_space<vmem>>, %arg4: memref<8x2048xf32, #tpu.memory_space<vmem>>, %arg5: memref<8x128xf32, #tpu.memory_space<vmem>>) attributes {dimension_semantics = [#tpu.dimension_semantics<parallel>], iteration_bounds = array<i64: 1>, scalar_prefetch = 0 : i64, scratch_operands = 0 : i64, tpu.core_type = #tpu.core_type<tc>, window_params = [{transform_indices = @transform_0, window_bounds = array<i64: 8, 32>}, {pipeline_mode = #tpu.pipeline_mode<synchronous>, transform_indices = @transform_1, window_bounds = array<i64: 32, 2176>}, {pipeline_mode = #tpu.pipeline_mode<synchronous>, transform_indices = @transform_2, window_bounds = array<i64: 1, 2176>}, {transform_indices = @transform_3, window_bounds = array<i64: 8, 2048>}, {transform_indices = @transform_4, window_bounds = array<i64: 8, 128>}]} {
    %c0 = arith.constant 0 : index
    %c0_0 = arith.constant 0 : index
    %0 = vector.load %arg1[%c0, %c0_0] : memref<8x32xf32, #tpu.memory_space<vmem>>, vector<8x32xf32>
    %c0_1 = arith.constant 0 : index
    %c0_2 = arith.constant 0 : index
    %1 = vector.load %arg2[%c0_1, %c0_2] : memref<32x2176xf32, #tpu.memory_space<vmem>>, vector<32x2048xf32>
    %cst = arith.constant dense<0.000000e+00> : vector<8x2048xf32>
    %2 = tpu.matmul %0, %1, %cst {dimension_numbers = #tpu.dot_dimension_numbers<[1], [0], [0], [1], [0, 0, 1, 1], [], []>} : vector<8x32xf32>, vector<32x2048xf32>, vector<8x2048xf32> -> vector<8x2048xf32>
    %c0_3 = arith.constant 0 : index
    %c0_4 = arith.constant 0 : index
    %3 = vector.load %arg3[%c0_3, %c0_4] : memref<1x2176xf32, #tpu.memory_space<vmem>>, vector<1x2048xf32>
    %4 = vector.broadcast %3 : vector<1x2048xf32> to vector<8x2048xf32>
    %5 = arith.addf %2, %4 : vector<8x2048xf32>
    %cst_5 = arith.constant dense<0xFF800000> : vector<8xf32>
    %6 = vector.multi_reduction <maximumf>, %5, %cst_5 [1] : vector<8x2048xf32> to vector<8xf32>
    %7 = vector.shape_cast %6 : vector<8xf32> to vector<8x1xf32>
    %8 = vector.broadcast %7 : vector<8x1xf32> to vector<8x2048xf32>
    %9 = arith.subf %5, %8 : vector<8x2048xf32>
    %10 = math.exp %9 : vector<8x2048xf32>
    %cst_6 = arith.constant dense<0.000000e+00> : vector<8xf32>
    %11 = vector.multi_reduction <add>, %10, %cst_6 [1] : vector<8x2048xf32> to vector<8xf32>
    %12 = vector.shape_cast %11 : vector<8xf32> to vector<8x1xf32>
    %13 = tpu.reciprocal %12 {approx = true} : vector<8x1xf32> -> vector<8x1xf32>
    %14 = arith.mulf %12, %13 : vector<8x1xf32>
    %cst_7 = arith.constant 2.000000e+00 : f32
    %15 = vector.broadcast %cst_7 : f32 to vector<8x1xf32>
    %16 = arith.subf %15, %14 : vector<8x1xf32>
    %17 = arith.mulf %13, %16 : vector<8x1xf32>
    %18 = vector.broadcast %17 : vector<8x1xf32> to vector<8x2048xf32>
    %19 = arith.mulf %10, %18 : vector<8x2048xf32>
    %c0_8 = arith.constant 0 : index
    %c0_9 = arith.constant 0 : index
    %20 = vector.load %arg4[%c0_8, %c0_9] : memref<8x2048xf32, #tpu.memory_space<vmem>>, vector<8x2048xf32>
    tpu.vector_store %arg4[%c0_8, %c0_9], %19 {strides = array<i32>} : memref<8x2048xf32, #tpu.memory_space<vmem>>, vector<8x2048xf32>,
    %c0_10 = arith.constant 0 : index
    %c2048 = arith.constant 2048 : index
    %21 = vector.load %arg2[%c0_10, %c2048] : memref<32x2176xf32, #tpu.memory_space<vmem>>, vector<32x128xf32>
    %cst_11 = arith.constant dense<0.000000e+00> : vector<8x128xf32>
    %22 = tpu.matmul %0, %21, %cst_11 {dimension_numbers = #tpu.dot_dimension_numbers<[1], [0], [0], [1], [0, 0, 1, 1], [], []>} : vector<8x32xf32>, vector<32x128xf32>, vector<8x128xf32> -> vector<8x128xf32>
    %c0_12 = arith.constant 0 : index
    %c2048_13 = arith.constant 2048 : index
    %23 = vector.load %arg3[%c0_12, %c2048_13] : memref<1x2176xf32, #tpu.memory_space<vmem>>, vector<1x128xf32>
    %24 = vector.broadcast %23 : vector<1x128xf32> to vector<8x128xf32>
    %25 = arith.addf %22, %24 : vector<8x128xf32>
    %26 = tpu.iota {dimensions = array<i32: 1>} : vector<8x128xi32>
    %c16_i32 = arith.constant 16 : i32
    %27 = vector.broadcast %c16_i32 : i32 to vector<8x128xi32>
    %28 = arith.cmpi slt, %26, %27 : vector<8x128xi32>
    %29 = math.exp %25 : vector<8x128xf32>
    %30 = arith.select %28, %29, %25 : vector<8x128xi1>, vector<8x128xf32>
    %c0_14 = arith.constant 0 : index
    %c0_15 = arith.constant 0 : index
    %31 = vector.load %arg5[%c0_14, %c0_15] : memref<8x128xf32, #tpu.memory_space<vmem>>, vector<8x128xf32>
    tpu.vector_store %arg5[%c0_14, %c0_15], %30 {strides = array<i32>} : memref<8x128xf32, #tpu.memory_space<vmem>>, vector<8x128xf32>,
    return
  }
  func.func @transform_0(%arg0: i32) -> (i32, i32) {
    %c0_i32 = arith.constant 0 : i32
    %c0_i32_0 = arith.constant 0 : i32
    return %arg0, %c0_i32 : i32, i32
  }
  func.func @transform_1(%arg0: i32) -> (i32, i32) {
    %c0_i32 = arith.constant 0 : i32
    %c0_i32_0 = arith.constant 0 : i32
    %c0_i32_1 = arith.constant 0 : i32
    return %c0_i32, %c0_i32_0 : i32, i32
  }
  func.func @transform_2(%arg0: i32) -> (i32, i32) {
    %c0_i32 = arith.constant 0 : i32
    %c0_i32_0 = arith.constant 0 : i32
    %c0_i32_1 = arith.constant 0 : i32
    return %c0_i32, %c0_i32_0 : i32, i32
  }
  func.func @transform_3(%arg0: i32) -> (i32, i32) {
    %c0_i32 = arith.constant 0 : i32
    %c0_i32_0 = arith.constant 0 : i32
    return %arg0, %c0_i32 : i32, i32
  }
  func.func @transform_4(%arg0: i32) -> (i32, i32) {
    %c0_i32 = arith.constant 0 : i32
    %c0_i32_0 = arith.constant 0 : i32
    return %arg0, %c0_i32 : i32, i32
  }
}

</mosaic_0001>

<llo_original>
// kernel: tpu_custom_call.1
$region0: #{tpu_custom_call.1}
  #allocation0 [shape = 'u32[]', space=smem, size = 0x4, offset = 0x4, fixed_abs, tag = 'smem constant byte address 0x4 - core index']
  #allocation1 [shape = 'u32[144,128]{1,0:T(1,128)}', space=vmem, size = 0x12000, scoped, tag = 'internal scratch']
  %s0 = inlined_call_operand.hbm [shape: f32[8,32], index: 0, kind: input, shape index: {}]
  %s1 = inlined_call_operand.hbm [shape: f32[32,2176], index: 1, kind: input, shape index: {}]
  %s2 = inlined_call_operand.hbm [shape: f32[1,2176], index: 2, kind: input, shape index: {}]
  %s3 = inlined_call_operand.hbm [shape: f32[8,2048], index: 3, kind: output, shape index: {0}]
  %s4 = inlined_call_operand.hbm [shape: f32[8,128], index: 4, kind: output, shape index: {1}]
  %5 = xla_tuple %s3, %s4
  %s6 = sld [smem:[#allocation0]]
  $region42: #{tpu_custom_call.1} parent=0
    _
  %s8 = ssub.s32 1, %s6
  %s9 = scalar_select 0, %s8, %s6
  $region1: #{tpu_custom_call.1} parent=0
    #allocation2 [shape = 'u8[4096]{0}', space=vmem, size = 0x1000, scoped, tag = 'input window, operand 0, single buffered']
    #allocation3 [shape = 's32[1]{0}', space=sflag, size = 0x4, scoped, tag = 'scoped memory for tpu_custom_call.1']
    #allocation4 [shape = 's32[1]{0}', space=sflag, size = 0x4, scoped, tag = 'scoped memory for tpu_custom_call.1']
    #allocation5 [shape = 'u8[278528]{0}', space=vmem, size = 0x44000, scoped, tag = 'input window, operand 1, single buffered']
    #allocation6 [shape = 's32[1]{0}', space=sflag, size = 0x4, scoped, tag = 'scoped memory for tpu_custom_call.1']
    #allocation7 [shape = 'u8[8704]{0}', space=vmem, size = 0x2400, scoped, tag = 'input window, operand 2, single buffered']
    #allocation8 [shape = 'u8[65536]{0}', space=vmem, size = 0x10000, scoped, tag = 'output window, operand 0, single buffered']
    #allocation9 [shape = 'u8[4096]{0}', space=vmem, size = 0x1000, scoped, tag = 'output window, operand 1, single buffered']
    #allocation10 [shape = 's32[1]{0}', space=sflag, size = 0x4, scoped, tag = 'scoped memory for tpu_custom_call.1']
    %10 = vsyncpa [#allocation3], 0
    %11 = vsyncpa [#allocation6], 0
    %12 = vsyncpa [#allocation4], 0
    %13 = vsyncpa [#allocation10], 0
    // Predicated region
    $region2: #{tpu_custom_call.1} parent=1 // pred_check
      _
    $region3: #{tpu_custom_call.1} parent=1 // pred_check_branch
      %15 = sbr.rel (0) target = $region5
    $region4: #{tpu_custom_call.1} parent=1 // pred_region
      %s17 = ssub.s32 128, 128
      %18 = vsyncadd [#allocation3], %s17
      %s20 = sshll.u32 [#allocation2], 4
      %s21 = int_to_ptr.vmem [resolvable:$true] %s20
      %23 = dma.hbm_to_vmem [thread:$0]  %s0, 128, %s21, [#allocation3]
    $region5: #{tpu_custom_call.1} parent=1 // pred_fallthru
      _
    // Predicated region
    $region6: #{tpu_custom_call.1} parent=1 // pred_check
      _
    $region7: #{tpu_custom_call.1} parent=1 // pred_check_branch
      %25 = sbr.rel (0) target = $region9
    $region8: #{tpu_custom_call.1} parent=1 // pred_region
      %s27 = ssub.s32 8704, 8704
      %28 = vsyncadd [#allocation6], %s27
      %s29 = sshll.u32 [#allocation5], 4
      %s30 = int_to_ptr.vmem [resolvable:$true] %s29
      %35 = dma.hbm_to_vmem [thread:$0]  %s1, 8704, %s30, [#allocation6], 2176, 2176, 136
    $region9: #{tpu_custom_call.1} parent=1 // pred_fallthru
      _
    // Predicated region
    $region10: #{tpu_custom_call.1} parent=1 // pred_check
      _
    $region11: #{tpu_custom_call.1} parent=1 // pred_check_branch
      %37 = sbr.rel (0) target = $region13
    $region12: #{tpu_custom_call.1} parent=1 // pred_region
      %s39 = ssub.s32 272, 272
      %40 = vsyncadd [#allocation6], %s39
      %s42 = sshll.u32 [#allocation7], 4
      %s43 = int_to_ptr.vmem [resolvable:$true] %s42
      %45 = dma.hbm_to_vmem [thread:$0]  %s2, 272, %s43, [#allocation6]
    $region13: #{tpu_custom_call.1} parent=1 // pred_fallthru
      _
    // Predicated region
    $region14: #{tpu_custom_call.1} parent=1 // pred_check
      _
    $region15: #{tpu_custom_call.1} parent=1 // pred_check_branch
      %47 = sbr.rel (0) target = $region17
    $region16: #{tpu_custom_call.1} parent=1 // pred_region
      %48 = dma.done [#allocation3], 128
    $region17: #{tpu_custom_call.1} parent=1 // pred_fallthru
      _
    // Predicated region
    $region18: #{tpu_custom_call.1} parent=1 // pred_check
      _
    $region19: #{tpu_custom_call.1} parent=1 // pred_check_branch
      %50 = sbr.rel (0) target = $region21
    $region20: #{tpu_custom_call.1} parent=1 // pred_region
      %51 = dma.done [#allocation6], 8704
    $region21: #{tpu_custom_call.1} parent=1 // pred_fallthru
      _
    // Predicated region
    $region22: #{tpu_custom_call.1} parent=1 // pred_check
      _
    $region23: #{tpu_custom_call.1} parent=1 // pred_check_branch
      %53 = sbr.rel (0) target = $region25
    $region24: #{tpu_custom_call.1} parent=1 // pred_region
      %54 = dma.done [#allocation6], 272
    $region25: #{tpu_custom_call.1} parent=1 // pred_fallthru
      _
    %v55 = vld [vmem:[#allocation2] sm:$0xff]
    %v56 = vld [vmem:[#allocation5] sm:$0xff]
    %v57 = vld [vmem:[#allocation5 + $0x8] sm:$0xff]
    %v58 = vld [vmem:[#allocation5 + $0x10] sm:$0xff]
    %v59 = vld [vmem:[#allocation5 + $0x18] sm:$0xff]
    %v60 = vld [vmem:[#allocation5 + $0x20] sm:$0xff]
    %v61 = vld [vmem:[#allocation5 + $0x28] sm:$0xff]
    %v62 = vld [vmem:[#allocation5 + $0x30] sm:$0xff]
    %v63 = vld [vmem:[#allocation5 + $0x38] sm:$0xff]
    %v64 = vld [vmem:[#allocation5 + $0x40] sm:$0xff]
    %v65 = vld [vmem:[#allocation5 + $0x48] sm:$0xff]
    %v66 = vld [vmem:[#allocation5 + $0x50] sm:$0xff]
    %v67 = vld [vmem:[#allocation5 + $0x58] sm:$0xff]
    %v68 = vld [vmem:[#allocation5 + $0x60] sm:$0xff]
    %v69 = vld [vmem:[#allocation5 + $0x68] sm:$0xff]
    %v70 = vld [vmem:[#allocation5 + $0x70] sm:$0xff]
    %v71 = vld [vmem:[#allocation5 + $0x78] sm:$0xff]
    %v72 = vld [vmem:[#allocation5 + $0x88] sm:$0xff]
    %v73 = vld [vmem:[#allocation5 + $0x90] sm:$0xff]
    %v74 = vld [vmem:[#allocation5 + $0x98] sm:$0xff]
    %v75 = vld [vmem:[#allocation5 + $0xa0] sm:$0xff]
    %v76 = vld [vmem:[#allocation5 + $0xa8] sm:$0xff]
    %v77 = vld [vmem:[#allocation5 + $0xb0] sm:$0xff]
    %v78 = vld [vmem:[#allocation5 + $0xb8] sm:$0xff]
    %v79 = vld [vmem:[#allocation5 + $0xc0] sm:$0xff]
    %v80 = vld [vmem:[#allocation5 + $0xc8] sm:$0xff]
    %v81 = vld [vmem:[#allocation5 + $0xd0] sm:$0xff]
    %v82 = vld [vmem:[#allocation5 + $0xd8] sm:$0xff]
    %v83 = vld [vmem:[#allocation5 + $0xe0] sm:$0xff]
    %v84 = vld [vmem:[#allocation5 + $0xe8] sm:$0xff]
    %v85 = vld [vmem:[#allocation5 + $0xf0] sm:$0xff]
    %v86 = vld [vmem:[#allocation5 + $0xf8] sm:$0xff]
    %v87 = vld [vmem:[#allocation5 + $0x100] sm:$0xff]
    %v88 = vld [vmem:[#allocation5 + $0x110] sm:$0xff]
    %v89 = vld [vmem:[#allocation5 + $0x118] sm:$0xff]
    %v90 = vld [vmem:[#allocation5 + $0x120] sm:$0xff]
    %v91 = vld [vmem:[#allocation5 + $0x128] sm:$0xff]
    %v92 = vld [vmem:[#allocation5 + $0x130] sm:$0xff]
    %v93 = vld [vmem:[#allocation5 + $0x138] sm:$0xff]
    %v94 = vld [vmem:[#allocation5 + $0x140] sm:$0xff]
    %v95 = vld [vmem:[#allocation5 + $0x148] sm:$0xff]
    %v96 = vld [vmem:[#allocation5 + $0x150] sm:$0xff]
    %v97 = vld [vmem:[#allocation5 + $0x158] sm:$0xff]
    %v98 = vld [vmem:[#allocation5 + $0x160] sm:$0xff]
    %v99 = vld [vmem:[#allocation5 + $0x168] sm:$0xff]
    %v100 = vld [vmem:[#allocation5 + $0x170] sm:$0xff]
    %v101 = vld [vmem:[#allocation5 + $0x178] sm:$0xff]
    %v102 = vld [vmem:[#allocation5 + $0x180] sm:$0xff]
    %v103 = vld [vmem:[#allocation5 + $0x188] sm:$0xff]
    %v104 = vld [vmem:[#allocation5 + $0x198] sm:$0xff]
    %v105 = vld [vmem:[#allocation5 + $0x1a0] sm:$0xff]
    %v106 = vld [vmem:[#allocation5 + $0x1a8] sm:$0xff]
    %v107 = vld [vmem:[#allocation5 + $0x1b0] sm:$0xff]
    %v108 = vld [vmem:[#allocation5 + $0x1b8] sm:$0xff]
    %v109 = vld [vmem:[#allocation5 + $0x1c0] sm:$0xff]
    %v110 = vld [vmem:[#allocation5 + $0x1c8] sm:$0xff]
    %v111 = vld [vmem:[#allocation5 + $0x1d0] sm:$0xff]
    %v112 = vld [vmem:[#allocation5 + $0x1d8] sm:$0xff]
    %v113 = vld [vmem:[#allocation5 + $0x1e0] sm:$0xff]
    %v114 = vld [vmem:[#allocation5 + $0x1e8] sm:$0xff]
    %v115 = vld [vmem:[#allocation5 + $0x1f0] sm:$0xff]
    %v116 = vld [vmem:[#allocation5 + $0x1f8] sm:$0xff]
    %v117 = vld [vmem:[#allocation5 + $0x200] sm:$0xff]
    %v118 = vld [vmem:[#allocation5 + $0x208] sm:$0xff]
    %v119 = vld [vmem:[#allocation5 + $0x210] sm:$0xff]
    %v120 = vld [vmem:[#allocation7] sm:$0xff]
    %v121 = vld [vmem:[#allocation7 + $0x8] sm:$0xff]
    %v124 = vlaneseq
    %v125 = vshrl.u32 %v124, 7
    %v126 = vsub.s32 0, %v125
    %v127 = vrot.slane %v120, %v126
    %v128 = vlaneseq
    %v129 = vshrl.u32 %v128, 7
    %v130 = vsub.s32 1, %v129
    %v131 = vrot.slane %v120, %v130
    %v132 = vlaneseq
    %v133 = vshrl.u32 %v132, 7
    %v134 = vsub.s32 2, %v133
    %v135 = vrot.slane %v120, %v134
    %v136 = vlaneseq
    %v137 = vshrl.u32 %v136, 7
    %v138 = vsub.s32 3, %v137
    %v139 = vrot.slane %v120, %v138
    %v140 = vlaneseq
    %v141 = vshrl.u32 %v140, 7
    %v142 = vsub.s32 4, %v141
    %v143 = vrot.slane %v120, %v142
    %v144 = vlaneseq
    %v145 = vshrl.u32 %v144, 7
    %v146 = vsub.s32 5, %v145
    %v147 = vrot.slane %v120, %v146
    %v148 = vlaneseq
    %v149 = vshrl.u32 %v148, 7
    %v150 = vsub.s32 6, %v149
    %v151 = vrot.slane %v120, %v150
    %v152 = vlaneseq
    %v153 = vshrl.u32 %v152, 7
    %v154 = vsub.s32 7, %v153
    %v155 = vrot.slane %v120, %v154
    %v156 = vlaneseq
    %v157 = vshrl.u32 %v156, 7
    %v158 = vsub.s32 0, %v157
    %v159 = vrot.slane %v121, %v158
    %v160 = vlaneseq
    %v161 = vshrl.u32 %v160, 7
    %v162 = vsub.s32 1, %v161
    %v163 = vrot.slane %v121, %v162
    %v164 = vlaneseq
    %v165 = vshrl.u32 %v164, 7
    %v166 = vsub.s32 2, %v165
    %v167 = vrot.slane %v121, %v166
    %v168 = vlaneseq
    %v169 = vshrl.u32 %v168, 7
    %v170 = vsub.s32 3, %v169
    %v171 = vrot.slane %v121, %v170
    %v172 = vlaneseq
    %v173 = vshrl.u32 %v172, 7
    %v174 = vsub.s32 4, %v173
    %v175 = vrot.slane %v121, %v174
    %v176 = vlaneseq
    %v177 = vshrl.u32 %v176, 7
    %v178 = vsub.s32 5, %v177
    %v179 = vrot.slane %v121, %v178
    %v180 = vlaneseq
    %v181 = vshrl.u32 %v180, 7
    %v182 = vsub.s32 6, %v181
    %v183 = vrot.slane %v121, %v182
    %v184 = vlaneseq
    %v185 = vshrl.u32 %v184, 7
    %v186 = vsub.s32 7, %v185
    %v187 = vrot.slane %v121, %v186
    %vm204 = vcmask 261120
    %v206 = vsel %vm204, %v55, 0
    %208 = vmatprep.subr.mxu0 0.0
    %209 = vmatpush1.msra.mxu0 0.0
    %210 = vmatprep.subr.mxu0 0.0
    %211 = vmatpush1.msra.mxu0 0.0
    %212 = vmatprep.subr.mxu0 0.0
    %213 = vmatpush1.msra.mxu0 0.0
    %214 = vmatprep.subr.mxu0 0.0
    %215 = vmatpush1.msra.mxu0 0.0
    %216 = vmatprep.subr.mxu0 0.0
    %217 = vmatpush1.msra.mxu0 0.0
    %218 = vmatprep.subr.mxu0 0.0
    %219 = vmatpush1.msra.mxu0 0.0
    %220 = vmatprep.subr.mxu0 0.0
    %221 = vmatpush1.msra.mxu0 0.0
    %222 = vmatprep.subr.mxu0 0.0
    %223 = vmatpush1.msra.mxu0 0.0
    %224 = vmatprep.subr.mxu0 0.0
    %225 = vmatpush1.msra.mxu0 0.0
    %226 = vmatprep.subr.mxu0 0.0
    %227 = vmatpush1.msra.mxu0 0.0
    %228 = vmatprep.subr.mxu0 0.0
    %229 = vmatpush1.msra.mxu0 0.0
    %230 = vmatprep.subr.mxu0 0.0
    %231 = vmatpush1.msra.mxu0 0.0
    %232 = vmatprep.subr.mxu0 %v105
    %233 = vmatpush1.msra.mxu0 %v104
    %234 = vmatprep.subr.mxu0 %v89
    %235 = vmatpush1.msra.mxu0 %v88
    %236 = vmatprep.subr.mxu0 %v73
    %237 = vmatpush1.msra.mxu0 %v72
    %238 = vmatprep.subr.mxu0 %v57
    %239 = vmatpush1.msra.mxu0 %v56
    %240 = vmatprep.subr.mxu0 0.0
    %241 = vmatpush2.msra.mxu0 0.0
    %242 = vmatprep.subr.mxu0 0.0
    %243 = vmatpush2.msra.mxu0 0.0
    %244 = vmatprep.subr.mxu0 0.0
    %245 = vmatpush2.msra.mxu0 0.0
    %246 = vmatprep.subr.mxu0 0.0
    %247 = vmatpush2.msra.mxu0 0.0
    %248 = vmatprep.subr.mxu0 0.0
    %249 = vmatpush2.msra.mxu0 0.0
    %250 = vmatprep.subr.mxu0 0.0
    %251 = vmatpush2.msra.mxu0 0.0
    %252 = vmatprep.subr.mxu0 0.0
    %253 = vmatpush2.msra.mxu0 0.0
    %254 = vmatprep.subr.mxu0 0.0
    %255 = vmatpush2.msra.mxu0 0.0
    %256 = vmatprep.subr.mxu0 0.0
    %257 = vmatpush2.msra.mxu0 0.0
    %258 = vmatprep.subr.mxu0 0.0
    %259 = vmatpush2.msra.mxu0 0.0
    %260 = vmatprep.subr.mxu0 0.0
    %261 = vmatpush2.msra.mxu0 0.0
    %262 = vmatprep.subr.mxu0 0.0
    %263 = vmatpush2.msra.mxu0 0.0
    %264 = vmatprep.subr.mxu0 0.0
    %265 = vmatpush2.msra.mxu0 0.0
    %266 = vmatprep.subr.mxu0 0.0
    %267 = vmatpush2.msra.mxu0 0.0
    %268 = vmatprep.subr.mxu0 0.0
    %269 = vmatpush2.msra.mxu0 0.0
    %270 = vmatprep.subr.mxu0 0.0
    %271 = vmatpush2.msra.mxu0 0.0
    %272 = vmatprep.mubr.f32.mxu0 0.0
    %273 = vmatmul.mubr.f32.gmra.mxu0 %v206
    %v274 = vpop.f32.mrf.mxu0
    %v275 = vadd.f32 %v127, %v274
    %v276 = vpop.f32.mrf.mxu0
    %v277 = vadd.f32 %v131, %v276
    %278 = vdwg.mxu0
    %279 = vmatprep.subr.mxu0 0.0
    %280 = vmatpush1.msra.mxu0 0.0
    %281 = vmatprep.subr.mxu0 0.0
    %282 = vmatpush1.msra.mxu0 0.0
    %283 = vmatprep.subr.mxu0 0.0
    %284 = vmatpush1.msra.mxu0 0.0
    %285 = vmatprep.subr.mxu0 0.0
    %286 = vmatpush1.msra.mxu0 0.0
    %287 = vmatprep.subr.mxu0 0.0
    %288 = vmatpush1.msra.mxu0 0.0
    %289 = vmatprep.subr.mxu0 0.0
    %290 = vmatpush1.msra.mxu0 0.0
    %291 = vmatprep.subr.mxu0 0.0
    %292 = vmatpush1.msra.mxu0 0.0
    %293 = vmatprep.subr.mxu0 0.0
    %294 = vmatpush1.msra.mxu0 0.0
    %295 = vmatprep.subr.mxu0 0.0
    %296 = vmatpush1.msra.mxu0 0.0
    %297 = vmatprep.subr.mxu0 0.0
    %298 = vmatpush1.msra.mxu0 0.0
    %299 = vmatprep.subr.mxu0 0.0
    %300 = vmatpush1.msra.mxu0 0.0
    %301 = vmatprep.subr.mxu0 0.0
    %302 = vmatpush1.msra.mxu0 0.0
    %303 = vmatprep.subr.mxu0 %v107
    %304 = vmatpush1.msra.mxu0 %v106
    %305 = vmatprep.subr.mxu0 %v91
    %306 = vmatpush1.msra.mxu0 %v90
    %307 = vmatprep.subr.mxu0 %v75
    %308 = vmatpush1.msra.mxu0 %v74
    %309 = vmatprep.subr.mxu0 %v59
    %310 = vmatpush1.msra.mxu0 %v58
    %311 = vmatprep.subr.mxu0 0.0
    %312 = vmatpush2.msra.mxu0 0.0
    %313 = vmatprep.subr.mxu0 0.0
    %314 = vmatpush2.msra.mxu0 0.0
    %315 = vmatprep.subr.mxu0 0.0
    %316 = vmatpush2.msra.mxu0 0.0
    %317 = vmatprep.subr.mxu0 0.0
    %318 = vmatpush2.msra.mxu0 0.0
    %319 = vmatprep.subr.mxu0 0.0
    %320 = vmatpush2.msra.mxu0 0.0
    %321 = vmatprep.subr.mxu0 0.0
    %322 = vmatpush2.msra.mxu0 0.0
    %323 = vmatprep.subr.mxu0 0.0
    %324 = vmatpush2.msra.mxu0 0.0
    %325 = vmatprep.subr.mxu0 0.0
    %326 = vmatpush2.msra.mxu0 0.0
    %327 = vmatprep.subr.mxu0 0.0
    %328 = vmatpush2.msra.mxu0 0.0
    %329 = vmatprep.subr.mxu0 0.0
    %330 = vmatpush2.msra.mxu0 0.0
    %331 = vmatprep.subr.mxu0 0.0
    %332 = vmatpush2.msra.mxu0 0.0
    %333 = vmatprep.subr.mxu0 0.0
    %334 = vmatpush2.msra.mxu0 0.0
    %335 = vmatprep.subr.mxu0 0.0
    %336 = vmatpush2.msra.mxu0 0.0
    %337 = vmatprep.subr.mxu0 0.0
    %338 = vmatpush2.msra.mxu0 0.0
    %339 = vmatprep.subr.mxu0 0.0
    %340 = vmatpush2.msra.mxu0 0.0
    %341 = vmatprep.subr.mxu0 0.0
    %342 = vmatpush2.msra.mxu0 0.0
    %343 = vmatprep.mubr.f32.mxu0 0.0
    %344 = vmatmul.mubr.f32.gmra.mxu0 %v206
    %v345 = vpop.f32.mrf.mxu0
    %v346 = vadd.f32 %v135, %v345
    %v347 = vpop.f32.mrf.mxu0
    %v348 = vadd.f32 %v139, %v347
    %349 = vdwg.mxu0
    %350 = vmatprep.subr.mxu0 0.0
    %351 = vmatpush1.msra.mxu0 0.0
    %352 = vmatprep.subr.mxu0 0.0
    %353 = vmatpush1.msra.mxu0 0.0
    %354 = vmatprep.subr.mxu0 0.0
    %355 = vmatpush1.msra.mxu0 0.0
    %356 = vmatprep.subr.mxu0 0.0
    %357 = vmatpush1.msra.mxu0 0.0
    %358 = vmatprep.subr.mxu0 0.0
    %359 = vmatpush1.msra.mxu0 0.0
    %360 = vmatprep.subr.mxu0 0.0
    %361 = vmatpush1.msra.mxu0 0.0
    %362 = vmatprep.subr.mxu0 0.0
    %363 = vmatpush1.msra.mxu0 0.0
    %364 = vmatprep.subr.mxu0 0.0
    %365 = vmatpush1.msra.mxu0 0.0
    %366 = vmatprep.subr.mxu0 0.0
    %367 = vmatpush1.msra.mxu0 0.0
    %368 = vmatprep.subr.mxu0 0.0
    %369 = vmatpush1.msra.mxu0 0.0
    %370 = vmatprep.subr.mxu0 0.0
    %371 = vmatpush1.msra.mxu0 0.0
    %372 = vmatprep.subr.mxu0 0.0
    %373 = vmatpush1.msra.mxu0 0.0
    %374 = vmatprep.subr.mxu0 %v109
    %375 = vmatpush1.msra.mxu0 %v108
    %376 = vmatprep.subr.mxu0 %v93
    %377 = vmatpush1.msra.mxu0 %v92
    %378 = vmatprep.subr.mxu0 %v77
    %379 = vmatpush1.msra.mxu0 %v76
    %380 = vmatprep.subr.mxu0 %v61
    %381 = vmatpush1.msra.mxu0 %v60
    %382 = vmatprep.subr.mxu0 0.0
    %383 = vmatpush2.msra.mxu0 0.0
    %384 = vmatprep.subr.mxu0 0.0
    %385 = vmatpush2.msra.mxu0 0.0
    %386 = vmatprep.subr.mxu0 0.0
    %387 = vmatpush2.msra.mxu0 0.0
    %388 = vmatprep.subr.mxu0 0.0
    %389 = vmatpush2.msra.mxu0 0.0
    %390 = vmatprep.subr.mxu0 0.0
    %391 = vmatpush2.msra.mxu0 0.0
    %392 = vmatprep.subr.mxu0 0.0
    %393 = vmatpush2.msra.mxu0 0.0
    %394 = vmatprep.subr.mxu0 0.0
    %395 = vmatpush2.msra.mxu0 0.0
    %396 = vmatprep.subr.mxu0 0.0
    %397 = vmatpush2.msra.mxu0 0.0
    %398 = vmatprep.subr.mxu0 0.0
    %399 = vmatpush2.msra.mxu0 0.0
    %400 = vmatprep.subr.mxu0 0.0
    %401 = vmatpush2.msra.mxu0 0.0
    %402 = vmatprep.subr.mxu0 0.0
    %403 = vmatpush2.msra.mxu0 0.0
    %404 = vmatprep.subr.mxu0 0.0
    %405 = vmatpush2.msra.mxu0 0.0
    %406 = vmatprep.subr.mxu0 0.0
    %407 = vmatpush2.msra.mxu0 0.0
    %408 = vmatprep.subr.mxu0 0.0
    %409 = vmatpush2.msra.mxu0 0.0
    %410 = vmatprep.subr.mxu0 0.0
    %411 = vmatpush2.msra.mxu0 0.0
    %412 = vmatprep.subr.mxu0 0.0
    %413 = vmatpush2.msra.mxu0 0.0
    %414 = vmatprep.mubr.f32.mxu0 0.0
    %415 = vmatmul.mubr.f32.gmra.mxu0 %v206
    %v416 = vpop.f32.mrf.mxu0
    %v417 = vadd.f32 %v143, %v416
    %v418 = vpop.f32.mrf.mxu0
    %v419 = vadd.f32 %v147, %v418
    %420 = vdwg.mxu0
    %421 = vmatprep.subr.mxu0 0.0
    %422 = vmatpush1.msra.mxu0 0.0
    %423 = vmatprep.subr.mxu0 0.0
    %424 = vmatpush1.msra.mxu0 0.0
    %425 = vmatprep.subr.mxu0 0.0
    %426 = vmatpush1.msra.mxu0 0.0
    %427 = vmatprep.subr.mxu0 0.0
    %428 = vmatpush1.msra.mxu0 0.0
    %429 = vmatprep.subr.mxu0 0.0
    %430 = vmatpush1.msra.mxu0 0.0
    %431 = vmatprep.subr.mxu0 0.0
    %432 = vmatpush1.msra.mxu0 0.0
    %433 = vmatprep.subr.mxu0 0.0
    %434 = vmatpush1.msra.mxu0 0.0
    %435 = vmatprep.subr.mxu0 0.0
    %436 = vmatpush1.msra.mxu0 0.0
    %437 = vmatprep.subr.mxu0 0.0
    %438 = vmatpush1.msra.mxu0 0.0
    %439 = vmatprep.subr.mxu0 0.0
    %440 = vmatpush1.msra.mxu0 0.0
    %441 = vmatprep.subr.mxu0 0.0
    %442 = vmatpush1.msra.mxu0 0.0
    %443 = vmatprep.subr.mxu0 0.0
    %444 = vmatpush1.msra.mxu0 0.0
    %445 = vmatprep.subr.mxu0 %v111
    %446 = vmatpush1.msra.mxu0 %v110
    %447 = vmatprep.subr.mxu0 %v95
    %448 = vmatpush1.msra.mxu0 %v94
    %449 = vmatprep.subr.mxu0 %v79
    %450 = vmatpush1.msra.mxu0 %v78
    %451 = vmatprep.subr.mxu0 %v63
    %452 = vmatpush1.msra.mxu0 %v62
    %453 = vmatprep.subr.mxu0 0.0
    %454 = vmatpush2.msra.mxu0 0.0
    %455 = vmatprep.subr.mxu0 0.0
    %456 = vmatpush2.msra.mxu0 0.0
    %457 = vmatprep.subr.mxu0 0.0
    %458 = vmatpush2.msra.mxu0 0.0
    %459 = vmatprep.subr.mxu0 0.0
    %460 = vmatpush2.msra.mxu0 0.0
    %461 = vmatprep.subr.mxu0 0.0
    %462 = vmatpush2.msra.mxu0 0.0
    %463 = vmatprep.subr.mxu0 0.0
    %464 = vmatpush2.msra.mxu0 0.0
    %465 = vmatprep.subr.mxu0 0.0
    %466 = vmatpush2.msra.mxu0 0.0
    %467 = vmatprep.subr.mxu0 0.0
    %468 = vmatpush2.msra.mxu0 0.0
    %469 = vmatprep.subr.mxu0 0.0
    %470 = vmatpush2.msra.mxu0 0.0
    %471 = vmatprep.subr.mxu0 0.0
    %472 = vmatpush2.msra.mxu0 0.0
    %473 = vmatprep.subr.mxu0 0.0
    %474 = vmatpush2.msra.mxu0 0.0
    %475 = vmatprep.subr.mxu0 0.0
    %476 = vmatpush2.msra.mxu0 0.0
    %477 = vmatprep.subr.mxu0 0.0
    %478 = vmatpush2.msra.mxu0 0.0
    %479 = vmatprep.subr.mxu0 0.0
    %480 = vmatpush2.msra.mxu0 0.0
    %481 = vmatprep.subr.mxu0 0.0
    %482 = vmatpush2.msra.mxu0 0.0
    %483 = vmatprep.subr.mxu0 0.0
    %484 = vmatpush2.msra.mxu0 0.0
    %485 = vmatprep.mubr.f32.mxu0 0.0
    %486 = vmatmul.mubr.f32.gmra.mxu0 %v206
    %v487 = vpop.f32.mrf.mxu0
    %v488 = vadd.f32 %v151, %v487
    %v489 = vpop.f32.mrf.mxu0
    %v490 = vadd.f32 %v155, %v489
    %491 = vdwg.mxu0
    %492 = vmatprep.subr.mxu0 0.0
    %493 = vmatpush1.msra.mxu0 0.0
    %494 = vmatprep.subr.mxu0 0.0
    %495 = vmatpush1.msra.mxu0 0.0
    %496 = vmatprep.subr.mxu0 0.0
    %497 = vmatpush1.msra.mxu0 0.0
    %498 = vmatprep.subr.mxu0 0.0
    %499 = vmatpush1.msra.mxu0 0.0
    %500 = vmatprep.subr.mxu0 0.0
    %501 = vmatpush1.msra.mxu0 0.0
    %502 = vmatprep.subr.mxu0 0.0
    %503 = vmatpush1.msra.mxu0 0.0
    %504 = vmatprep.subr.mxu0 0.0
    %505 = vmatpush1.msra.mxu0 0.0
    %506 = vmatprep.subr.mxu0 0.0
    %507 = vmatpush1.msra.mxu0 0.0
    %508 = vmatprep.subr.mxu0 0.0
    %509 = vmatpush1.msra.mxu0 0.0
    %510 = vmatprep.subr.mxu0 0.0
    %511 = vmatpush1.msra.mxu0 0.0
    %512 = vmatprep.subr.mxu0 0.0
    %513 = vmatpush1.msra.mxu0 0.0
    %514 = vmatprep.subr.mxu0 0.0
    %515 = vmatpush1.msra.mxu0 0.0
    %516 = vmatprep.subr.mxu0 %v113
    %517 = vmatpush1.msra.mxu0 %v112
    %518 = vmatprep.subr.mxu0 %v97
    %519 = vmatpush1.msra.mxu0 %v96
    %520 = vmatprep.subr.mxu0 %v81
    %521 = vmatpush1.msra.mxu0 %v80
    %522 = vmatprep.subr.mxu0 %v65
    %523 = vmatpush1.msra.mxu0 %v64
    %524 = vmatprep.subr.mxu0 0.0
    %525 = vmatpush2.msra.mxu0 0.0
    %526 = vmatprep.subr.mxu0 0.0
    %527 = vmatpush2.msra.mxu0 0.0
    %528 = vmatprep.subr.mxu0 0.0
    %529 = vmatpush2.msra.mxu0 0.0
    %530 = vmatprep.subr.mxu0 0.0
    %531 = vmatpush2.msra.mxu0 0.0
    %532 = vmatprep.subr.mxu0 0.0
    %533 = vmatpush2.msra.mxu0 0.0
    %534 = vmatprep.subr.mxu0 0.0
    %535 = vmatpush2.msra.mxu0 0.0
    %536 = vmatprep.subr.mxu0 0.0
    %537 = vmatpush2.msra.mxu0 0.0
    %538 = vmatprep.subr.mxu0 0.0
    %539 = vmatpush2.msra.mxu0 0.0
    %540 = vmatprep.subr.mxu0 0.0
    %541 = vmatpush2.msra.mxu0 0.0
    %542 = vmatprep.subr.mxu0 0.0
    %543 = vmatpush2.msra.mxu0 0.0
    %544 = vmatprep.subr.mxu0 0.0
    %545 = vmatpush2.msra.mxu0 0.0
    %546 = vmatprep.subr.mxu0 0.0
    %547 = vmatpush2.msra.mxu0 0.0
    %548 = vmatprep.subr.mxu0 0.0
    %549 = vmatpush2.msra.mxu0 0.0
    %550 = vmatprep.subr.mxu0 0.0
    %551 = vmatpush2.msra.mxu0 0.0
    %552 = vmatprep.subr.mxu0 0.0
    %553 = vmatpush2.msra.mxu0 0.0
    %554 = vmatprep.subr.mxu0 0.0
    %555 = vmatpush2.msra.mxu0 0.0
    %556 = vmatprep.mubr.f32.mxu0 0.0
    %557 = vmatmul.mubr.f32.gmra.mxu0 %v206
    %v558 = vpop.f32.mrf.mxu0
    %v559 = vadd.f32 %v159, %v558
    %v560 = vpop.f32.mrf.mxu0
    %v561 = vadd.f32 %v163, %v560
    %562 = vdwg.mxu0
    %563 = vmatprep.subr.mxu0 0.0
    %564 = vmatpush1.msra.mxu0 0.0
    %565 = vmatprep.subr.mxu0 0.0
    %566 = vmatpush1.msra.mxu0 0.0
    %567 = vmatprep.subr.mxu0 0.0
    %568 = vmatpush1.msra.mxu0 0.0
    %569 = vmatprep.subr.mxu0 0.0
    %570 = vmatpush1.msra.mxu0 0.0
    %571 = vmatprep.subr.mxu0 0.0
    %572 = vmatpush1.msra.mxu0 0.0
    %573 = vmatprep.subr.mxu0 0.0
    %574 = vmatpush1.msra.mxu0 0.0
    %575 = vmatprep.subr.mxu0 0.0
    %576 = vmatpush1.msra.mxu0 0.0
    %577 = vmatprep.subr.mxu0 0.0
    %578 = vmatpush1.msra.mxu0 0.0
    %579 = vmatprep.subr.mxu0 0.0
    %580 = vmatpush1.msra.mxu0 0.0
    %581 = vmatprep.subr.mxu0 0.0
    %582 = vmatpush1.msra.mxu0 0.0
    %583 = vmatprep.subr.mxu0 0.0
    %584 = vmatpush1.msra.mxu0 0.0
    %585 = vmatprep.subr.mxu0 0.0
    %586 = vmatpush1.msra.mxu0 0.0
    %587 = vmatprep.subr.mxu0 %v115
    %588 = vmatpush1.msra.mxu0 %v114
    %589 = vmatprep.subr.mxu0 %v99
    %590 = vmatpush1.msra.mxu0 %v98
    %591 = vmatprep.subr.mxu0 %v83
    %592 = vmatpush1.msra.mxu0 %v82
    %593 = vmatprep.subr.mxu0 %v67
    %594 = vmatpush1.msra.mxu0 %v66
    %595 = vmatprep.subr.mxu0 0.0
    %596 = vmatpush2.msra.mxu0 0.0
    %597 = vmatprep.subr.mxu0 0.0
    %598 = vmatpush2.msra.mxu0 0.0
    %599 = vmatprep.subr.mxu0 0.0
    %600 = vmatpush2.msra.mxu0 0.0
    %601 = vmatprep.subr.mxu0 0.0
    %602 = vmatpush2.msra.mxu0 0.0
    %603 = vmatprep.subr.mxu0 0.0
    %604 = vmatpush2.msra.mxu0 0.0
    %605 = vmatprep.subr.mxu0 0.0
    %606 = vmatpush2.msra.mxu0 0.0
    %607 = vmatprep.subr.mxu0 0.0
    %608 = vmatpush2.msra.mxu0 0.0
    %609 = vmatprep.subr.mxu0 0.0
    %610 = vmatpush2.msra.mxu0 0.0
    %611 = vmatprep.subr.mxu0 0.0
    %612 = vmatpush2.msra.mxu0 0.0
    %613 = vmatprep.subr.mxu0 0.0
    %614 = vmatpush2.msra.mxu0 0.0
    %615 = vmatprep.subr.mxu0 0.0
    %616 = vmatpush2.msra.mxu0 0.0
    %617 = vmatprep.subr.mxu0 0.0
    %618 = vmatpush2.msra.mxu0 0.0
    %619 = vmatprep.subr.mxu0 0.0
    %620 = vmatpush2.msra.mxu0 0.0
    %621 = vmatprep.subr.mxu0 0.0
    %622 = vmatpush2.msra.mxu0 0.0
    %623 = vmatprep.subr.mxu0 0.0
    %624 = vmatpush2.msra.mxu0 0.0
    %625 = vmatprep.subr.mxu0 0.0
    %626 = vmatpush2.msra.mxu0 0.0
    %627 = vmatprep.mubr.f32.mxu0 0.0
    %628 = vmatmul.mubr.f32.gmra.mxu0 %v206
    %v629 = vpop.f32.mrf.mxu0
    %v630 = vadd.f32 %v167, %v629
    %v631 = vpop.f32.mrf.mxu0
    %v632 = vadd.f32 %v171, %v631
    %633 = vdwg.mxu0
    %634 = vmatprep.subr.mxu0 0.0
    %635 = vmatpush1.msra.mxu0 0.0
    %636 = vmatprep.subr.mxu0 0.0
    %637 = vmatpush1.msra.mxu0 0.0
    %638 = vmatprep.subr.mxu0 0.0
    %639 = vmatpush1.msra.mxu0 0.0
    %640 = vmatprep.subr.mxu0 0.0
    %641 = vmatpush1.msra.mxu0 0.0
    %642 = vmatprep.subr.mxu0 0.0
    %643 = vmatpush1.msra.mxu0 0.0
    %644 = vmatprep.subr.mxu0 0.0
    %645 = vmatpush1.msra.mxu0 0.0
    %646 = vmatprep.subr.mxu0 0.0
    %647 = vmatpush1.msra.mxu0 0.0
    %648 = vmatprep.subr.mxu0 0.0
    %649 = vmatpush1.msra.mxu0 0.0
    %650 = vmatprep.subr.mxu0 0.0
    %651 = vmatpush1.msra.mxu0 0.0
    %652 = vmatprep.subr.mxu0 0.0
    %653 = vmatpush1.msra.mxu0 0.0
    %654 = vmatprep.subr.mxu0 0.0
    %655 = vmatpush1.msra.mxu0 0.0
    %656 = vmatprep.subr.mxu0 0.0
    %657 = vmatpush1.msra.mxu0 0.0
    %658 = vmatprep.subr.mxu0 %v117
    %659 = vmatpush1.msra.mxu0 %v116
    %660 = vmatprep.subr.mxu0 %v101
    %661 = vmatpush1.msra.mxu0 %v100
    %662 = vmatprep.subr.mxu0 %v85
    %663 = vmatpush1.msra.mxu0 %v84
    %664 = vmatprep.subr.mxu0 %v69
    %665 = vmatpush1.msra.mxu0 %v68
    %666 = vmatprep.subr.mxu0 0.0
    %667 = vmatpush2.msra.mxu0 0.0
    %668 = vmatprep.subr.mxu0 0.0
    %669 = vmatpush2.msra.mxu0 0.0
    %670 = vmatprep.subr.mxu0 0.0
    %671 = vmatpush2.msra.mxu0 0.0
    %672 = vmatprep.subr.mxu0 0.0
    %673 = vmatpush2.msra.mxu0 0.0
    %674 = vmatprep.subr.mxu0 0.0
    %675 = vmatpush2.msra.mxu0 0.0
    %676 = vmatprep.subr.mxu0 0.0
    %677 = vmatpush2.msra.mxu0 0.0
    %678 = vmatprep.subr.mxu0 0.0
    %679 = vmatpush2.msra.mxu0 0.0
    %680 = vmatprep.subr.mxu0 0.0
    %681 = vmatpush2.msra.mxu0 0.0
    %682 = vmatprep.subr.mxu0 0.0
    %683 = vmatpush2.msra.mxu0 0.0
    %684 = vmatprep.subr.mxu0 0.0
    %685 = vmatpush2.msra.mxu0 0.0
    %686 = vmatprep.subr.mxu0 0.0
    %687 = vmatpush2.msra.mxu0 0.0
    %688 = vmatprep.subr.mxu0 0.0
    %689 = vmatpush2.msra.mxu0 0.0
    %690 = vmatprep.subr.mxu0 0.0
    %691 = vmatpush2.msra.mxu0 0.0
    %692 = vmatprep.subr.mxu0 0.0
    %693 = vmatpush2.msra.mxu0 0.0
    %694 = vmatprep.subr.mxu0 0.0
    %695 = vmatpush2.msra.mxu0 0.0
    %696 = vmatprep.subr.mxu0 0.0
    %697 = vmatpush2.msra.mxu0 0.0
    %698 = vmatprep.mubr.f32.mxu0 0.0
    %699 = vmatmul.mubr.f32.gmra.mxu0 %v206
    %v700 = vpop.f32.mrf.mxu0
    %v701 = vadd.f32 %v175, %v700
    %v702 = vpop.f32.mrf.mxu0
    %v703 = vadd.f32 %v179, %v702
    %704 = vdwg.mxu0
    %705 = vmatprep.subr.mxu0 0.0
    %706 = vmatpush1.msra.mxu0 0.0
    %707 = vmatprep.subr.mxu0 0.0
    %708 = vmatpush1.msra.mxu0 0.0
    %709 = vmatprep.subr.mxu0 0.0
    %710 = vmatpush1.msra.mxu0 0.0
    %711 = vmatprep.subr.mxu0 0.0
    %712 = vmatpush1.msra.mxu0 0.0
    %713 = vmatprep.subr.mxu0 0.0
    %714 = vmatpush1.msra.mxu0 0.0
    %715 = vmatprep.subr.mxu0 0.0
    %716 = vmatpush1.msra.mxu0 0.0
    %717 = vmatprep.subr.mxu0 0.0
    %718 = vmatpush1.msra.mxu0 0.0
    %719 = vmatprep.subr.mxu0 0.0
    %720 = vmatpush1.msra.mxu0 0.0
    %721 = vmatprep.subr.mxu0 0.0
    %722 = vmatpush1.msra.mxu0 0.0
    %723 = vmatprep.subr.mxu0 0.0
    %724 = vmatpush1.msra.mxu0 0.0
    %725 = vmatprep.subr.mxu0 0.0
    %726 = vmatpush1.msra.mxu0 0.0
    %727 = vmatprep.subr.mxu0 0.0
    %728 = vmatpush1.msra.mxu0 0.0
    %729 = vmatprep.subr.mxu0 %v119
    %730 = vmatpush1.msra.mxu0 %v118
    %731 = vmatprep.subr.mxu0 %v103
    %732 = vmatpush1.msra.mxu0 %v102
    %733 = vmatprep.subr.mxu0 %v87
    %734 = vmatpush1.msra.mxu0 %v86
    %735 = vmatprep.subr.mxu0 %v71
    %736 = vmatpush1.msra.mxu0 %v70
    %737 = vmatprep.subr.mxu0 0.0
    %738 = vmatpush2.msra.mxu0 0.0
    %739 = vmatprep.subr.mxu0 0.0
    %740 = vmatpush2.msra.mxu0 0.0
    %741 = vmatprep.subr.mxu0 0.0
    %742 = vmatpush2.msra.mxu0 0.0
    %743 = vmatprep.subr.mxu0 0.0
    %744 = vmatpush2.msra.mxu0 0.0
    %745 = vmatprep.subr.mxu0 0.0
    %746 = vmatpush2.msra.mxu0 0.0
    %747 = vmatprep.subr.mxu0 0.0
    %748 = vmatpush2.msra.mxu0 0.0
    %749 = vmatprep.subr.mxu0 0.0
    %750 = vmatpush2.msra.mxu0 0.0
    %751 = vmatprep.subr.mxu0 0.0
    %752 = vmatpush2.msra.mxu0 0.0
    %753 = vmatprep.subr.mxu0 0.0
    %754 = vmatpush2.msra.mxu0 0.0
    %755 = vmatprep.subr.mxu0 0.0
    %756 = vmatpush2.msra.mxu0 0.0
    %757 = vmatprep.subr.mxu0 0.0
    %758 = vmatpush2.msra.mxu0 0.0
    %759 = vmatprep.subr.mxu0 0.0
    %760 = vmatpush2.msra.mxu0 0.0
    %761 = vmatprep.subr.mxu0 0.0
    %762 = vmatpush2.msra.mxu0 0.0
    %763 = vmatprep.subr.mxu0 0.0
    %764 = vmatpush2.msra.mxu0 0.0
    %765 = vmatprep.subr.mxu0 0.0
    %766 = vmatpush2.msra.mxu0 0.0
    %767 = vmatprep.subr.mxu0 0.0
    %768 = vmatpush2.msra.mxu0 0.0
    %769 = vmatprep.mubr.f32.mxu0 0.0
    %770 = vmatmul.mubr.f32.gmra.mxu0 %v206
    %v771 = vpop.f32.mrf.mxu0
    %v772 = vadd.f32 %v183, %v771
    %v773 = vpop.f32.mrf.mxu0
    %v774 = vadd.f32 %v187, %v773
    %775 = vdwg.mxu0
    %v776 = vmax.f32 %v275, %v417
    %v777 = vmax.f32 %v277, %v419
    %v778 = vmax.f32 %v346, %v488
    %v779 = vmax.f32 %v348, %v490
    %v780 = vmax.f32 %v776, %v559
    %v781 = vmax.f32 %v777, %v561
    %v782 = vmax.f32 %v778, %v630
    %v783 = vmax.f32 %v779, %v632
    %v784 = vmax.f32 %v780, %v701
    %v785 = vmax.f32 %v781, %v703
    %v786 = vmax.f32 %v782, %v772
    %v787 = vmax.f32 %v783, %v774
    %v788 = vmax.f32 %v784, %v785
    %v789 = vmax.f32 %v786, %v787
    %v790 = vmax.f32 %v788, %v789
    %791 = vmax.xlane.f32.xlu0 %v790
    %v792 = vpop.xlane.xlu0 %791
    %v793 = vsub.f32 %v275, %v792
    %v794 = vsub.f32 %v277, %v792
    %v795 = vsub.f32 %v346, %v792
    %v796 = vsub.f32 %v348, %v792
    %v797 = vsub.f32 %v417, %v792
    %v798 = vsub.f32 %v419, %v792
    %v799 = vsub.f32 %v488, %v792
    %v800 = vsub.f32 %v490, %v792
    %v801 = vsub.f32 %v559, %v792
    %v802 = vsub.f32 %v561, %v792
    %v803 = vsub.f32 %v630, %v792
    %v804 = vsub.f32 %v632, %v792
    %v805 = vsub.f32 %v701, %v792
    %v806 = vsub.f32 %v703, %v792
    %v807 = vsub.f32 %v772, %v792
    %v808 = vsub.f32 %v774, %v792
    %v809 = vmul.f32 %v793, 1.442695
    %v810 = vpow.pop %v809
    %v811 = vmul.f32 %v794, 1.442695
    %v812 = vpow.pop %v811
    %v813 = vmul.f32 %v795, 1.442695
    %v814 = vpow.pop %v813
    %v815 = vmul.f32 %v796, 1.442695
    %v816 = vpow.pop %v815
    %v817 = vmul.f32 %v797, 1.442695
    %v818 = vpow.pop %v817
    %v819 = vmul.f32 %v798, 1.442695
    %v820 = vpow.pop %v819
    %v821 = vmul.f32 %v799, 1.442695
    %v822 = vpow.pop %v821
    %v823 = vmul.f32 %v800, 1.442695
    %v824 = vpow.pop %v823
    %v825 = vmul.f32 %v801, 1.442695
    %v826 = vpow.pop %v825
    %v827 = vmul.f32 %v802, 1.442695
    %v828 = vpow.pop %v827
    %v829 = vmul.f32 %v803, 1.442695
    %v830 = vpow.pop %v829
    %v831 = vmul.f32 %v804, 1.442695
    %v832 = vpow.pop %v831
    %v833 = vmul.f32 %v805, 1.442695
    %v834 = vpow.pop %v833
    %v835 = vmul.f32 %v806, 1.442695
    %v836 = vpow.pop %v835
    %v837 = vmul.f32 %v807, 1.442695
    %v838 = vpow.pop %v837
    %v839 = vmul.f32 %v808, 1.442695
    %v840 = vpow.pop %v839
    %v841 = vadd.f32 %v810, %v812
    %v842 = vadd.f32 %v841, %v814
    %v843 = vadd.f32 %v842, %v816
    %v844 = vadd.f32 %v843, %v818
    %v845 = vadd.f32 %v844, %v820
    %v846 = vadd.f32 %v845, %v822
    %v847 = vadd.f32 %v846, %v824
    %v848 = vadd.f32 %v847, %v826
    %v849 = vadd.f32 %v848, %v828
    %v850 = vadd.f32 %v849, %v830
    %v851 = vadd.f32 %v850, %v832
    %v852 = vadd.f32 %v851, %v834
    %v853 = vadd.f32 %v852, %v836
    %v854 = vadd.f32 %v853, %v838
    %v855 = vadd.f32 %v854, %v840
    %856 = vadd.xlane.f32.xlu0 %v855
    %v857 = vpop.xlane.xlu0 %856
    %v858 = vrcp.pop %v857
    %v859 = vmul.f32 %v857, %v858
    %v860 = vsub.f32 2.0, %v859
    %v861 = vmul.f32 %v858, %v860
    %v862 = vmul.f32 %v810, %v861
    %v863 = vmul.f32 %v812, %v861
    %v864 = vmul.f32 %v814, %v861
    %v865 = vmul.f32 %v816, %v861
    %v866 = vmul.f32 %v818, %v861
    %v867 = vmul.f32 %v820, %v861
    %v868 = vmul.f32 %v822, %v861
    %v869 = vmul.f32 %v824, %v861
    %v870 = vmul.f32 %v826, %v861
    %v871 = vmul.f32 %v828, %v861
    %v872 = vmul.f32 %v830, %v861
    %v873 = vmul.f32 %v832, %v861
    %v874 = vmul.f32 %v834, %v861
    %v875 = vmul.f32 %v836, %v861
    %v876 = vmul.f32 %v838, %v861
    %v877 = vmul.f32 %v840, %v861
    %878 = vst [vmem:[#allocation8] sm:$0xff] %v862
    %879 = vst [vmem:[#allocation8 + $0x8] sm:$0xff] %v863
    %880 = vst [vmem:[#allocation8 + $0x10] sm:$0xff] %v864
    %881 = vst [vmem:[#allocation8 + $0x18] sm:$0xff] %v865
    %882 = vst [vmem:[#allocation8 + $0x20] sm:$0xff] %v866
    %883 = vst [vmem:[#allocation8 + $0x28] sm:$0xff] %v867
    %884 = vst [vmem:[#allocation8 + $0x30] sm:$0xff] %v868
    %885 = vst [vmem:[#allocation8 + $0x38] sm:$0xff] %v869
    %886 = vst [vmem:[#allocation8 + $0x40] sm:$0xff] %v870
    %887 = vst [vmem:[#allocation8 + $0x48] sm:$0xff] %v871
    %888 = vst [vmem:[#allocation8 + $0x50] sm:$0xff] %v872
    %889 = vst [vmem:[#allocation8 + $0x58] sm:$0xff] %v873
    %890 = vst [vmem:[#allocation8 + $0x60] sm:$0xff] %v874
    %891 = vst [vmem:[#allocation8 + $0x68] sm:$0xff] %v875
    %892 = vst [vmem:[#allocation8 + $0x70] sm:$0xff] %v876
    %893 = vst [vmem:[#allocation8 + $0x78] sm:$0xff] %v877
    %v894 = vld [vmem:[#allocation5 + $0x80] sm:$0xff]
    %v895 = vld [vmem:[#allocation5 + $0x108] sm:$0xff]
    %v896 = vld [vmem:[#allocation5 + $0x190] sm:$0xff]
    %v897 = vld [vmem:[#allocation5 + $0x218] sm:$0xff]
    %v898 = vld [vmem:[#allocation7 + $0x10] sm:$0x1]
    %v900 = vlaneseq
    %v901 = vshrl.u32 %v900, 7
    %v902 = vsub.s32 0, %v901
    %v903 = vrot.slane %v898, %v902
    %905 = vmatprep.subr.mxu0 0.0
    %906 = vmatpush1.msra.mxu0 0.0
    %907 = vmatprep.subr.mxu0 0.0
    %908 = vmatpush1.msra.mxu0 0.0
    %909 = vmatprep.subr.mxu0 0.0
    %910 = vmatpush1.msra.mxu0 0.0
    %911 = vmatprep.subr.mxu0 0.0
    %912 = vmatpush1.msra.mxu0 0.0
    %913 = vmatprep.subr.mxu0 0.0
    %914 = vmatpush1.msra.mxu0 0.0
    %915 = vmatprep.subr.mxu0 0.0
    %916 = vmatpush1.msra.mxu0 0.0
    %917 = vmatprep.subr.mxu0 0.0
    %918 = vmatpush1.msra.mxu0 0.0
    %919 = vmatprep.subr.mxu0 0.0
    %920 = vmatpush1.msra.mxu0 0.0
    %921 = vmatprep.subr.mxu0 0.0
    %922 = vmatpush1.msra.mxu0 0.0
    %923 = vmatprep.subr.mxu0 0.0
    %924 = vmatpush1.msra.mxu0 0.0
    %925 = vmatprep.subr.mxu0 0.0
    %926 = vmatpush1.msra.mxu0 0.0
    %927 = vmatprep.subr.mxu0 0.0
    %928 = vmatpush1.msra.mxu0 0.0
    %929 = vmatprep.subr.mxu0 0.0
    %930 = vmatpush1.msra.mxu0 %v897
    %931 = vmatprep.subr.mxu0 0.0
    %932 = vmatpush1.msra.mxu0 %v896
    %933 = vmatprep.subr.mxu0 0.0
    %934 = vmatpush1.msra.mxu0 %v895
    %935 = vmatprep.subr.mxu0 0.0
    %936 = vmatpush1.msra.mxu0 %v894
    %937 = vmatprep.subr.mxu0 0.0
    %938 = vmatpush2.msra.mxu0 0.0
    %939 = vmatprep.subr.mxu0 0.0
    %940 = vmatpush2.msra.mxu0 0.0
    %941 = vmatprep.subr.mxu0 0.0
    %942 = vmatpush2.msra.mxu0 0.0
    %943 = vmatprep.subr.mxu0 0.0
    %944 = vmatpush2.msra.mxu0 0.0
    %945 = vmatprep.subr.mxu0 0.0
    %946 = vmatpush2.msra.mxu0 0.0
    %947 = vmatprep.subr.mxu0 0.0
    %948 = vmatpush2.msra.mxu0 0.0
    %949 = vmatprep.subr.mxu0 0.0
    %950 = vmatpush2.msra.mxu0 0.0
    %951 = vmatprep.subr.mxu0 0.0
    %952 = vmatpush2.msra.mxu0 0.0
    %953 = vmatprep.subr.mxu0 0.0
    %954 = vmatpush2.msra.mxu0 0.0
    %955 = vmatprep.subr.mxu0 0.0
    %956 = vmatpush2.msra.mxu0 0.0
    %957 = vmatprep.subr.mxu0 0.0
    %958 = vmatpush2.msra.mxu0 0.0
    %959 = vmatprep.subr.mxu0 0.0
    %960 = vmatpush2.msra.mxu0 0.0
    %961 = vmatprep.subr.mxu0 0.0
    %962 = vmatpush2.msra.mxu0 0.0
    %963 = vmatprep.subr.mxu0 0.0
    %964 = vmatpush2.msra.mxu0 0.0
    %965 = vmatprep.subr.mxu0 0.0
    %966 = vmatpush2.msra.mxu0 0.0
    %967 = vmatprep.subr.mxu0 0.0
    %968 = vmatpush2.msra.mxu0 0.0
    %969 = vmatprep.mubr.f32.mxu0 0.0
    %970 = vmatmul.mubr.f32.gmra.mxu0 %v206
    %v971 = vpop.f32.mrf.mxu0
    %v972 = vadd.f32 %v903, %v971
    %v973 = vpop.f32.mrf.mxu0
    %974 = vdwg.mxu0
    %v975 = vlaneseq
    %v976 = vand.u32 %v975, 127
    %vm977 = vcmp.lt.s32.totalorder %v976, 16
    %v978 = vmul.f32 %v972, 1.442695
    %v979 = vpow.pop %v978
    %v980 = vsel %vm977, %v979, %v972
    %981 = vst [vmem:[#allocation9] sm:$0xff] %v980
    // Predicated region
    $region26: #{tpu_custom_call.1} parent=1 // pred_check
      _
    $region27: #{tpu_custom_call.1} parent=1 // pred_check_branch
      %983 = sbr.rel (0) target = $region29
    $region28: #{tpu_custom_call.1} parent=1 // pred_region
      %s985 = ssub.s32 2048, 2048
      %986 = vsyncadd [#allocation4], %s985
      %s988 = sshll.u32 [#allocation8], 4
      %s989 = int_to_ptr.vmem [resolvable:$true] %s988
      %991 = dma.vmem_to_hbm [thread:$0]  %s989, 2048, %s3, [#allocation4]
    $region29: #{tpu_custom_call.1} parent=1 // pred_fallthru
      _
    // Predicated region
    $region30: #{tpu_custom_call.1} parent=1 // pred_check
      _
    $region31: #{tpu_custom_call.1} parent=1 // pred_check_branch
      %993 = sbr.rel (0) target = $region33
    $region32: #{tpu_custom_call.1} parent=1 // pred_region
      %s995 = ssub.s32 128, 128
      %996 = vsyncadd [#allocation10], %s995
      %s998 = sshll.u32 [#allocation9], 4
      %s999 = int_to_ptr.vmem [resolvable:$true] %s998
      %1001 = dma.vmem_to_hbm [thread:$0]  %s999, 128, %s4, [#allocation10]
    $region33: #{tpu_custom_call.1} parent=1 // pred_fallthru
      _
    // Predicated region
    $region34: #{tpu_custom_call.1} parent=1 // pred_check
      _
    $region35: #{tpu_custom_call.1} parent=1 // pred_check_branch
      %1003 = sbr.rel (0) target = $region37
    $region36: #{tpu_custom_call.1} parent=1 // pred_region
      %1004 = dma.done [#allocation4], 2048
    $region37: #{tpu_custom_call.1} parent=1 // pred_fallthru
      _
    // Predicated region
    $region38: #{tpu_custom_call.1} parent=1 // pred_check
      _
    $region39: #{tpu_custom_call.1} parent=1 // pred_check_branch
      %1006 = sbr.rel (0) target = $region41
    $region40: #{tpu_custom_call.1} parent=1 // pred_region
      %1007 = dma.done [#allocation10], 128
    $region41: #{tpu_custom_call.1} parent=1 // pred_fallthru
      _
    %1008 = vsyncpa [#allocation3], 1
    %1009 = vsyncpa [#allocation6], 1
    %1010 = vsyncpa [#allocation4], 1
    %1011 = vsyncpa [#allocation10], 1

</llo_original>
